<compile_context>
chip_gen: v6e
topology: v6e:2x2x1
jax: 0.10.0
libtpu: 0.0.40
codegen_flags: <defaults>
</compile_context>

<pallas_src>
import jax
import jax.numpy as jnp
from jax.experimental import pallas as pl
from jax.experimental.pallas import tpu as pltpu


_SQRT_2_OVER_PI = 0.7978845608028654


def _gelu_tanh_f32(h):
    # 0.5*x*(1 + tanh(sqrt(2/pi)*(x + 0.044715*x^3))), computed in f32.
    h = h.astype(jnp.float32)
    return 0.5 * h * (1.0 + jnp.tanh(jnp.float32(_SQRT_2_OVER_PI)
                                     * (h + 0.044715 * (h * h * h))))


def _ffn_kernel_scratch(x_ref, w1_ref, b1_ref, w2_ref, b2_ref, o_ref, acc_ref):
    """Variant with a resident f32 accumulator (output dtype != f32)."""
    k = pl.program_id(1)

    h = jnp.dot(x_ref[...], w1_ref[...], preferred_element_type=jnp.float32)
    h = h + b1_ref[...].astype(jnp.float32)
    g = _gelu_tanh_f32(h)
    part = jnp.dot(g.astype(w2_ref.dtype), w2_ref[...],
                   preferred_element_type=jnp.float32)

    @pl.when(k == 0)
    def _():
        acc_ref[...] = part          # write, not zero-init + RMW

    @pl.when(k > 0)
    def _():
        acc_ref[...] += part

    @pl.when(k == pl.num_programs(1) - 1)
    def _():
        o_ref[...] = (acc_ref[...] + b2_ref[...].astype(jnp.float32)
                      ).astype(o_ref.dtype)


def _ffn_kernel_inplace(x_ref, w1_ref, b1_ref, w2_ref, b2_ref, o_ref):
    """Variant accumulating directly into the resident f32 output tile."""
    k = pl.program_id(1)

    h = jnp.dot(x_ref[...], w1_ref[...], preferred_element_type=jnp.float32)
    h = h + b1_ref[...].astype(jnp.float32)
    g = _gelu_tanh_f32(h)
    part = jnp.dot(g.astype(w2_ref.dtype), w2_ref[...],
                   preferred_element_type=jnp.float32)

    @pl.when(k == 0)
    def _():
        o_ref[...] = part

    @pl.when(k > 0)
    def _():
        o_ref[...] = o_ref[...] + part

    @pl.when(k == pl.num_programs(1) - 1)
    def _():
        o_ref[...] = o_ref[...] + b2_ref[...].astype(jnp.float32)


def _round_up(n, m):
    return ((n + m - 1) // m) * m


def _vmem_capacity_bytes():
    try:
        return int(pltpu.get_tpu_info().vmem_capacity_bytes)
    except Exception:
        return 64 * 1024 * 1024      # conservative (v7x-sized) fallback


def _hidden_tile_candidates(hidden, target):
    """Divisors of `hidden` that are multiples of 128, descending, <= target."""
    cands = [d for d in range(128, hidden + 1, 128)
             if hidden % d == 0 and d <= max(target, 128)]
    if not cands:
        return [hidden]              # full-dim block is always legal
    return sorted(cands, reverse=True)


def _estimate_vmem_bytes(tm, th, emb, x_bytes, w_bytes, out_bytes,
                         use_scratch, w_bufs):
    total = 2 * tm * emb * x_bytes                     # x tile (double buffered)
    total += w_bufs * (emb * th + th * emb) * w_bytes  # w1 + w2 chunks
    total += 2 * (8 * th + 8 * emb) * 4                # biases (sublane padded)
    total += 2 * tm * emb * out_bytes                  # output tile
    if use_scratch:
        total += tm * emb * 4                          # f32 accumulator
    return total


def feed_forward(x, w1, b1, w2, b2, *, token_tile=512, hidden_tile=1024,
                 compute_dtype=jnp.bfloat16):
    """FeedForward: GELU(x @ w1 + b1) @ w2 + b2.

    x: [batch, seq, emb]; w1: [emb, 4*emb]; b1: [4*emb]; w2: [4*emb, emb];
    b2: [emb].  Weights are stored [in_features, out_features] (PyTorch
    weight.T).  x/w1/w2 are cast once to `compute_dtype` (bf16 default; pass
    jnp.float32 or None for exact f32 math); accumulation is f32; the output
    keeps x.dtype.
    """
    batch, seq, emb = x.shape
    hidden = w1.shape[1]
    tokens = batch * seq
    out_dtype = x.dtype

    if compute_dtype is None:
        compute_dtype = x.dtype

    x2d = x.reshape(tokens, emb).astype(compute_dtype)
    w1c = w1.astype(compute_dtype)
    w2c = w2.astype(compute_dtype)
    b1_2d = b1.reshape(1, hidden).astype(jnp.float32)
    b2_2d = b2.reshape(1, emb).astype(jnp.float32)

    x_bytes = jnp.dtype(compute_dtype).itemsize
    w_bytes = x_bytes
    out_bytes = jnp.dtype(out_dtype).itemsize
    use_scratch = jnp.dtype(out_dtype) != jnp.dtype(jnp.float32)

    # Generation-aware VMEM budget: ~85% of physical, >=8 MiB headroom.
    cap = _vmem_capacity_bytes()
    vmem_limit = min(int(cap * 0.85), cap - 8 * 1024 * 1024)
    vmem_limit = max(vmem_limit, 16 * 1024 * 1024)
    fit_budget = int(vmem_limit * 0.9)   # leave room for compiler scratch

    # ---- tile selection -------------------------------------------------
    # Token tile = arithmetic-intensity knob (flops-per-weight-byte ~= TM).
    tm = min(_round_up(tokens, 8), _round_up(max(token_tile, 8), 8))
    # Keep >=2 blocks on the parallel token axis (v7x has 2 TensorCores).
    if tokens >= 16 and pl.cdiv(tokens, tm) < 2:
        tm = max(8, _round_up((tokens + 1) // 2, 8))

    th_cands = _hidden_tile_candidates(hidden, hidden_tile)
    ti = 0
    th = th_cands[ti]

    # Shrink the hidden tile first (accumulator/matmul dims stay big), then
    # the token tile, until the working set fits the VMEM budget.
    # TODO(synk): for very large emb on v7x, add an emb-output tiling axis
    # instead of shrinking TM/TH further.
    while _estimate_vmem_bytes(tm, th, emb, x_bytes, w_bytes, out_bytes,
                               use_scratch, 2) > fit_budget:
        if ti + 1 < len(th_cands):
            ti += 1
            th = th_cands[ti]
        elif tm > 8:
            tm = max(8, _round_up(tm // 2, 8))
        else:
            break

    # Pad the token axis so tm always divides it (never emits a block shape
    # violating the (8,128) rule); padded rows are sliced off afterwards.
    tokens_p = _round_up(tokens, tm)
    if tokens_p != tokens:
        x2d = jnp.pad(x2d, ((0, tokens_p - tokens), (0, 0)))

    grid = (tokens_p // tm, hidden // th)

    # Triple-buffer the streamed weight chunks when there is VMEM slack and
    # enough reduction steps for it to matter.
    w_bufs = 2
    if (grid[1] >= 4 and
            _estimate_vmem_bytes(tm, th, emb, x_bytes, w_bytes, out_bytes,
                                 use_scratch, 3) <= fit_budget):
        w_bufs = 3

    def _wspec(shape, index_map):
        if w_bufs > 2:
            return pl.BlockSpec(shape, index_map,
                                pipeline_mode=pl.Buffered(w_bufs))
        return pl.BlockSpec(shape, index_map)

    in_specs = [
        pl.BlockSpec((tm, emb), lambda i, k: (i, 0)),   # x tile (resident over k)
        _wspec((emb, th), lambda i, k: (0, k)),         # w1 chunk
        pl.BlockSpec((1, th), lambda i, k: (0, k)),     # b1 chunk
        _wspec((th, emb), lambda i, k: (k, 0)),         # w2 chunk
        pl.BlockSpec((1, emb), lambda i, k: (0, 0)),    # b2 (grid-invariant)
    ]
    out_spec = pl.BlockSpec((tm, emb), lambda i, k: (i, 0))

    if use_scratch:
        kernel = _ffn_kernel_scratch
        scratch_shapes = [pltpu.VMEM((tm, emb), jnp.float32)]
    else:
        kernel = _ffn_kernel_inplace
        scratch_shapes = []

    cost = pl.CostEstimate(
        flops=2 * 2 * tokens_p * emb * hidden,          # two matmuls
        transcendentals=tokens_p * hidden,              # tanh
        bytes_accessed=(tokens_p * emb * x_bytes
                        + (w1.size + w2.size) * w_bytes * (tokens_p // tm)
                        + (b1.size + b2.size) * 4
                        + tokens_p * emb * out_bytes))

    out2d = pl.pallas_call(
        kernel,
        out_shape=jax.ShapeDtypeStruct((tokens_p, emb), out_dtype),
        grid_spec=pltpu.PrefetchScalarGridSpec(
            num_scalar_prefetch=0,
            grid=grid,
            in_specs=in_specs,
            out_specs=out_spec,
            scratch_shapes=scratch_shapes,
        ),
        compiler_params=pltpu.CompilerParams(
            dimension_semantics=("parallel", "arbitrary"),
            vmem_limit_bytes=int(vmem_limit)),
        cost_estimate=cost,
    )(x2d, w1c, b1_2d, w2c, b2_2d)

    if tokens_p != tokens:
        out2d = out2d[:tokens]
    return out2d.reshape(batch, seq, emb)


def _reference(x, w1, b1, w2, b2):
    xf = x.astype(jnp.float32)
    h = xf @ w1.astype(jnp.float32) + b1.astype(jnp.float32)
    c = jnp.sqrt(jnp.float32(2.0) / jnp.pi)
    g = 0.5 * h * (1.0 + jnp.tanh(c * (h + 0.044715 * h ** 3)))
    return g @ w2.astype(jnp.float32) + b2.astype(jnp.float32)


if __name__ == "__main__":
    # Small config matching the module: emb_dim=32 -> hidden = 4*32 = 128.
    batch, seq, emb = 2, 8, 32
    hidden = 4 * emb

    key = jax.random.PRNGKey(0)
    kx, kw1, kb1, kw2, kb2 = jax.random.split(key, 5)

    x = jax.random.normal(kx, (batch, seq, emb), dtype=jnp.float32)
    w1 = jax.random.normal(kw1, (emb, hidden), dtype=jnp.float32) * 0.02
    b1 = jax.random.normal(kb1, (hidden,), dtype=jnp.float32) * 0.02
    w2 = jax.random.normal(kw2, (hidden, emb), dtype=jnp.float32) * 0.02
    b2 = jax.random.normal(kb2, (emb,), dtype=jnp.float32) * 0.02

    ref = _reference(x.reshape(-1, emb), w1, b1, w2, b2).reshape(batch, seq, emb)

    # 1) Exact f32 compute path (in-place f32 accumulation, no scratch).
    out_f32 = jax.block_until_ready(
        feed_forward(x, w1, b1, w2, b2, compute_dtype=jnp.float32))
    assert out_f32.shape == (batch, seq, emb)
    assert jnp.allclose(out_f32, ref, atol=2e-4, rtol=2e-4), "f32 path mismatch"

    # 2) Default bf16 fast path (bf16 MXU operands, f32 accumulation).
    out_bf16c = jax.block_until_ready(feed_forward(x, w1, b1, w2, b2))
    assert jnp.allclose(out_bf16c, ref, atol=2e-2, rtol=2e-2), \
        "bf16-compute path mismatch"

    # 3) bf16 inputs / bf16 output (exercises the scratch-accumulator kernel).
    xb = x.astype(jnp.bfloat16)
    out_bf16 = jax.block_until_ready(
        feed_forward(xb, w1.astype(jnp.bfloat16), b1, w2.astype(jnp.bfloat16), b2))
    ref_b = _reference(xb.reshape(-1, emb), w1.astype(jnp.bfloat16), b1,
                       w2.astype(jnp.bfloat16), b2).reshape(batch, seq, emb)
    assert out_bf16.dtype == jnp.bfloat16
    assert jnp.allclose(out_bf16.astype(jnp.float32), ref_b, atol=3e-2, rtol=3e-2), \
        "bf16 path mismatch"

    # 4) Awkward token count (exercises token-axis padding), exact f32 path.
    x_odd = jax.random.normal(kx, (2, 9, emb), dtype=jnp.float32)
    out_odd = jax.block_until_ready(
        feed_forward(x_odd, w1, b1, w2, b2, compute_dtype=jnp.float32))
    ref_odd = _reference(x_odd.reshape(-1, emb), w1, b1, w2, b2).reshape(2, 9, emb)
    assert jnp.allclose(out_odd, ref_odd, atol=2e-4, rtol=2e-4), "padded path mismatch"

    print("KERNEL_OK")
</pallas_src>

<mosaic_0001>
module attributes {stable_mosaic.version = 11 : i64} {
  func.func @_ffn_kernel_inplace(%arg0: i32, %arg1: i32, %arg2: memref<8x32xf32, #tpu.memory_space<vmem>>, %arg3: memref<32x128xf32, #tpu.memory_space<vmem>>, %arg4: memref<1x128xf32, #tpu.memory_space<vmem>>, %arg5: memref<128x32xf32, #tpu.memory_space<vmem>>, %arg6: memref<1x32xf32, #tpu.memory_space<vmem>>, %arg7: memref<8x32xf32, #tpu.memory_space<vmem>>) attributes {dimension_semantics = [#tpu.dimension_semantics<parallel>, #tpu.dimension_semantics<arbitrary>], iteration_bounds = array<i64: 2, 1>, scalar_prefetch = 0 : i64, scratch_operands = 0 : i64, tpu.core_type = #tpu.core_type<tc>, window_params = [{transform_indices = @transform_0, window_bounds = array<i64: 8, 32>}, {transform_indices = @transform_1, window_bounds = array<i64: 32, 128>}, {transform_indices = @transform_2, window_bounds = array<i64: 1, 128>}, {transform_indices = @transform_3, window_bounds = array<i64: 128, 32>}, {pipeline_mode = #tpu.pipeline_mode<synchronous>, transform_indices = @transform_4, window_bounds = array<i64: 1, 32>}, {transform_indices = @transform_5, window_bounds = array<i64: 8, 32>}]} {
    %c0 = arith.constant 0 : index
    %c0_0 = arith.constant 0 : index
    %0 = vector.load %arg2[%c0, %c0_0] : memref<8x32xf32, #tpu.memory_space<vmem>>, vector<8x32xf32>
    %c0_1 = arith.constant 0 : index
    %c0_2 = arith.constant 0 : index
    %1 = vector.load %arg3[%c0_1, %c0_2] : memref<32x128xf32, #tpu.memory_space<vmem>>, vector<32x128xf32>
    %cst = arith.constant dense<0.000000e+00> : vector<8x128xf32>
    %2 = tpu.matmul %0, %1, %cst {dimension_numbers = #tpu.dot_dimension_numbers<[1], [0], [0], [1], [0, 0, 1, 1], [], []>} : vector<8x32xf32>, vector<32x128xf32>, vector<8x128xf32> -> vector<8x128xf32>
    %c0_3 = arith.constant 0 : index
    %c0_4 = arith.constant 0 : index
    %3 = vector.load %arg4[%c0_3, %c0_4] : memref<1x128xf32, #tpu.memory_space<vmem>>, vector<1x128xf32>
    %4 = vector.broadcast %3 : vector<1x128xf32> to vector<8x128xf32>
    %5 = arith.addf %2, %4 : vector<8x128xf32>
    %cst_5 = arith.constant 5.000000e-01 : f32
    %6 = vector.broadcast %cst_5 : f32 to vector<8x128xf32>
    %7 = arith.mulf %6, %5 : vector<8x128xf32>
    %8 = arith.mulf %5, %5 : vector<8x128xf32>
    %9 = arith.mulf %8, %5 : vector<8x128xf32>
    %cst_6 = arith.constant 4.471500e-02 : f32
    %10 = vector.broadcast %cst_6 : f32 to vector<8x128xf32>
    %11 = arith.mulf %10, %9 : vector<8x128xf32>
    %12 = arith.addf %5, %11 : vector<8x128xf32>
    %cst_7 = arith.constant 0.797884583 : f32
    %13 = vector.broadcast %cst_7 : f32 to vector<8x128xf32>
    %14 = arith.mulf %13, %12 : vector<8x128xf32>
    %15 = math.tanh %14 : vector<8x128xf32>
    %cst_8 = arith.constant 1.000000e+00 : f32
    %16 = vector.broadcast %cst_8 : f32 to vector<8x128xf32>
    %17 = arith.addf %16, %15 : vector<8x128xf32>
    %18 = arith.mulf %7, %17 : vector<8x128xf32>
    %c0_9 = arith.constant 0 : index
    %c0_10 = arith.constant 0 : index
    %19 = vector.load %arg5[%c0_9, %c0_10] : memref<128x32xf32, #tpu.memory_space<vmem>>, vector<128x32xf32>
    %cst_11 = arith.constant dense<0.000000e+00> : vector<8x32xf32>
    %20 = tpu.matmul %18, %19, %cst_11 {dimension_numbers = #tpu.dot_dimension_numbers<[1], [0], [0], [1], [0, 0, 1, 1], [], []>} : vector<8x128xf32>, vector<128x32xf32>, vector<8x32xf32> -> vector<8x32xf32>
    %c0_i32 = arith.constant 0 : i32
    %21 = arith.cmpi eq, %arg1, %c0_i32 : i32
    %22 = arith.extui %21 : i1 to i32
    %c0_i32_12 = arith.constant 0 : i32
    %23 = arith.cmpi ne, %22, %c0_i32_12 : i32
    scf.if %23 {
      %c0_17 = arith.constant 0 : index
      %c0_18 = arith.constant 0 : index
      %30 = vector.load %arg7[%c0_17, %c0_18] : memref<8x32xf32, #tpu.memory_space<vmem>>, vector<8x32xf32>
      tpu.vector_store %arg7[%c0_17, %c0_18], %20 {strides = array<i32>} : memref<8x32xf32, #tpu.memory_space<vmem>>, vector<8x32xf32>,
    } else {
    }
    %c0_i32_13 = arith.constant 0 : i32
    %24 = arith.cmpi sgt, %arg1, %c0_i32_13 : i32
    %25 = arith.extui %24 : i1 to i32
    %c0_i32_14 = arith.constant 0 : i32
    %26 = arith.cmpi ne, %25, %c0_i32_14 : i32
    scf.if %26 {
      %c0_17 = arith.constant 0 : index
      %c0_18 = arith.constant 0 : index
      %30 = vector.load %arg7[%c0_17, %c0_18] : memref<8x32xf32, #tpu.memory_space<vmem>>, vector<8x32xf32>
      %31 = arith.addf %30, %20 : vector<8x32xf32>
      %c0_19 = arith.constant 0 : index
      %c0_20 = arith.constant 0 : index
      %32 = vector.load %arg7[%c0_19, %c0_20] : memref<8x32xf32, #tpu.memory_space<vmem>>, vector<8x32xf32>
      tpu.vector_store %arg7[%c0_19, %c0_20], %31 {strides = array<i32>} : memref<8x32xf32, #tpu.memory_space<vmem>>, vector<8x32xf32>,
    } else {
    }
    %c0_i32_15 = arith.constant 0 : i32
    %27 = arith.cmpi eq, %arg1, %c0_i32_15 : i32
    %28 = arith.extui %27 : i1 to i32
    %c0_i32_16 = arith.constant 0 : i32
    %29 = arith.cmpi ne, %28, %c0_i32_16 : i32
    scf.if %29 {
      %c0_17 = arith.constant 0 : index
      %c0_18 = arith.constant 0 : index
      %30 = vector.load %arg7[%c0_17, %c0_18] : memref<8x32xf32, #tpu.memory_space<vmem>>, vector<8x32xf32>
      %c0_19 = arith.constant 0 : index
      %c0_20 = arith.constant 0 : index
      %31 = vector.load %arg6[%c0_19, %c0_20] : memref<1x32xf32, #tpu.memory_space<vmem>>, vector<1x32xf32>
      %32 = vector.broadcast %31 : vector<1x32xf32> to vector<8x32xf32>
      %33 = arith.addf %30, %32 : vector<8x32xf32>
      %c0_21 = arith.constant 0 : index
      %c0_22 = arith.constant 0 : index
      %34 = vector.load %arg7[%c0_21, %c0_22] : memref<8x32xf32, #tpu.memory_space<vmem>>, vector<8x32xf32>
      tpu.vector_store %arg7[%c0_21, %c0_22], %33 {strides = array<i32>} : memref<8x32xf32, #tpu.memory_space<vmem>>, vector<8x32xf32>,
    } else {
    }
    return
  }
  func.func @transform_0(%arg0: i32, %arg1: i32) -> (i32, i32) {
    %c0_i32 = arith.constant 0 : i32
    %c0_i32_0 = arith.constant 0 : i32
    return %arg0, %c0_i32 : i32, i32
  }
  func.func @transform_1(%arg0: i32, %arg1: i32) -> (i32, i32) {
    %c0_i32 = arith.constant 0 : i32
    %c0_i32_0 = arith.constant 0 : i32
    return %c0_i32, %arg1 : i32, i32
  }
  func.func @transform_2(%arg0: i32, %arg1: i32) -> (i32, i32) {
    %c0_i32 = arith.constant 0 : i32
    %c0_i32_0 = arith.constant 0 : i32
    return %c0_i32, %arg1 : i32, i32
  }
  func.func @transform_3(%arg0: i32, %arg1: i32) -> (i32, i32) {
    %c0_i32 = arith.constant 0 : i32
    %c0_i32_0 = arith.constant 0 : i32
    return %arg1, %c0_i32 : i32, i32
  }
  func.func @transform_4(%arg0: i32, %arg1: i32) -> (i32, i32) {
    %c0_i32 = arith.constant 0 : i32
    %c0_i32_0 = arith.constant 0 : i32
    %c0_i32_1 = arith.constant 0 : i32
    return %c0_i32, %c0_i32_0 : i32, i32
  }
  func.func @transform_5(%arg0: i32, %arg1: i32) -> (i32, i32) {
    %c0_i32 = arith.constant 0 : i32
    %c0_i32_0 = arith.constant 0 : i32
    return %arg0, %c0_i32 : i32, i32
  }
}

</mosaic_0001>

<llo_original>
// kernel: tpu_custom_call.1
$region0: #{tpu_custom_call.1}
  #allocation0 [shape = 'u32[]', space=smem, size = 0x4, offset = 0x4, fixed_abs, tag = 'smem constant byte address 0x4 - core index']
  #allocation1 [shape = 'u32[144,128]{1,0:T(1,128)}', space=vmem, size = 0x12000, scoped, tag = 'internal scratch']
  %s0 = inlined_call_operand.vmem [shape: f32[16,32], index: 0, kind: input, shape index: {}]
  %s1 = inlined_call_operand.vmem [shape: f32[32,128], index: 1, kind: input, shape index: {}]
  %s2 = inlined_call_operand.vmem [shape: f32[1,128], index: 2, kind: input, shape index: {}]
  %s3 = inlined_call_operand.vmem [shape: f32[128,32], index: 3, kind: input, shape index: {}]
  %s4 = inlined_call_operand.vmem [shape: f32[1,32], index: 4, kind: input, shape index: {}]
  %s5 = inlined_call_operand.hbm [shape: f32[16,32], index: 5, kind: output, shape index: {}]
  %s6 = sld [smem:[#allocation0]]
  $region65: #{tpu_custom_call.1} parent=0
    _
  %s8 = ssub.s32 1, %s6
  %s9 = scalar_select 0, %s8, %s6
  $region1: #{tpu_custom_call.1} parent=0
    #allocation2 [shape = 'u8[8192]{0}', space=vmem, size = 0x2000, scoped, tag = 'output window, operand 0']
    #allocation3 [shape = 's32[2]{0}', space=sflag, size = 0x8, scoped, tag = 'scoped memory for tpu_custom_call.1']
    %10 = vsyncpa [#allocation3], 0
    %s11 = scalar_lea.sflag [#allocation3], 1
    %12 = vsyncpa %s11, 0
    loop: start=0, step=1, limit=4
    $region2: #{tpu_custom_call.1} parent=1 // loop_pre_header
      _
    $region3: #{tpu_custom_call.1} parent=1 // loop_header
      %s14 = sphi 0, %s18
      %p15 = scmp.ge.s32.totalorder %s14, 4
      %s21 = sphi 0, %s33
      %s22 = sphi 0, %s29
      %s23 = sphi 0, %s21
      %s24 = sphi 0, %s22
      %s25 = sphi 0, %s23
      %s26 = sphi 0, %s24
      %s36 = sphi 0, %s38
      %s39 = sphi 0, %s36
      %s40 = sphi 0, %s39
      %s56 = sphi 0, %s40
      %s62 = sphi 0, %s64
      %s65 = sphi 0, %s62
      %s66 = sphi 0, %s65
      %s82 = sphi 0, %s66
      %s88 = sphi 0, %s90
      %s91 = sphi 0, %s88
      %s92 = sphi 0, %s91
      %s108 = sphi 0, %s92
      %s114 = sphi 0, %s116
      %s117 = sphi 0, %s114
      %s118 = sphi 0, %s117
      %s134 = sphi 0, %s118
      %s138 = sphi 0, %s138
      %s140 = sphi 0, %s138
      %s141 = sphi 0, %s140
      %s155 = sphi 0, %s141
      %s161 = sphi 0, %s163
      %s164 = sphi 0, %s161
      %s165 = sphi 0, %s164
      %s181 = sphi 0, %s165
    $region4: #{tpu_custom_call.1} parent=1 // loop_header_branch
      %17 = sbr.rel (%p15) target = $region8
    $region5: #{tpu_custom_call.1} parent=1 // loop_body
      %s19 = ssub.s32 %s14, 1
      %s20 = ssub.s32 %s14, 2
      %s27 = sadd.s32 1, %s22
      %p28 = scmp.ge.s32.totalorder %s27, 1
      %s29 = scalar_select %p28, 0, %s27
      %s30 = sadd.s32 1, %s21
      %s31 = scalar_select %p28, %s30, %s21
      %p32 = scmp.ge.s32.totalorder %s31, 2
      %s33 = scalar_select %p32, 0, %s31
      %s34 = ssub.s32 %s21, %s33
      %p35 = scmp.eq.s32.totalorder %s34, 0
      %s37 = sadd.s32 %s36, 1
      %s38 = scalar_select %p35, %s36, %s37
      %p41 = pneg %p35
      %p42 = scmp.eq.s32.totalorder %s14, 1
      %p43 = por %p41, %p42
      %p44 = scmp.ne.s32.totalorder %s36, %s39
      %p45 = scmp.eq.s32.totalorder %s14, 0
      %p46 = por %p44, %p45
      %p47 = scmp.ne.s32.totalorder %s36, %s39
      %p48 = scmp.eq.s32.totalorder %s19, 1
      %p49 = por %p47, %p48
      %p50 = scmp.ne.s32.totalorder %s39, %s40
      %p51 = scmp.eq.s32.totalorder %s19, 0
      %p52 = por %p50, %p51
      %p53 = scmp.ne.s32.totalorder %s39, %s40
      %p54 = scmp.eq.s32.totalorder %s20, 1
      %p55 = por %p53, %p54
      %p57 = scmp.ne.s32.totalorder %s40, %s56
      %p58 = scmp.eq.s32.totalorder %s20, 0
      %p59 = por %p57, %p58
      %s60 = ssub.s32 %s22, %s29
      %p61 = scmp.eq.s32.totalorder %s60, 0
      %s63 = sadd.s32 %s62, 1
      %s64 = scalar_select %p61, %s62, %s63
      %p67 = pneg %p61
      %p68 = scmp.eq.s32.totalorder %s14, 1
      %p69 = por %p67, %p68
      %p70 = scmp.ne.s32.totalorder %s62, %s65
      %p71 = scmp.eq.s32.totalorder %s14, 0
      %p72 = por %p70, %p71
      %p73 = scmp.ne.s32.totalorder %s62, %s65
      %p74 = scmp.eq.s32.totalorder %s19, 1
      %p75 = por %p73, %p74
      %p76 = scmp.ne.s32.totalorder %s65, %s66
      %p77 = scmp.eq.s32.totalorder %s19, 0
      %p78 = por %p76, %p77
      %p79 = scmp.ne.s32.totalorder %s65, %s66
      %p80 = scmp.eq.s32.totalorder %s20, 1
      %p81 = por %p79, %p80
      %p83 = scmp.ne.s32.totalorder %s66, %s82
      %p84 = scmp.eq.s32.totalorder %s20, 0
      %p85 = por %p83, %p84
      %s86 = ssub.s32 %s22, %s29
      %p87 = scmp.eq.s32.totalorder %s86, 0
      %s89 = sadd.s32 %s88, 1
      %s90 = scalar_select %p87, %s88, %s89
      %p93 = pneg %p87
      %p94 = scmp.eq.s32.totalorder %s14, 1
      %p95 = por %p93, %p94
      %p96 = scmp.ne.s32.totalorder %s88, %s91
      %p97 = scmp.eq.s32.totalorder %s14, 0
      %p98 = por %p96, %p97
      %p99 = scmp.ne.s32.totalorder %s88, %s91
      %p100 = scmp.eq.s32.totalorder %s19, 1
      %p101 = por %p99, %p100
      %p102 = scmp.ne.s32.totalorder %s91, %s92
      %p103 = scmp.eq.s32.totalorder %s19, 0
      %p104 = por %p102, %p103
      %p105 = scmp.ne.s32.totalorder %s91, %s92
      %p106 = scmp.eq.s32.totalorder %s20, 1
      %p107 = por %p105, %p106
      %p109 = scmp.ne.s32.totalorder %s92, %s108
      %p110 = scmp.eq.s32.totalorder %s20, 0
      %p111 = por %p109, %p110
      %s112 = ssub.s32 %s22, %s29
      %p113 = scmp.eq.s32.totalorder %s112, 0
      %s115 = sadd.s32 %s114, 1
      %s116 = scalar_select %p113, %s114, %s115
      %p119 = pneg %p113
      %p120 = scmp.eq.s32.totalorder %s14, 1
      %p121 = por %p119, %p120
      %p122 = scmp.ne.s32.totalorder %s114, %s117
      %p123 = scmp.eq.s32.totalorder %s14, 0
      %p124 = por %p122, %p123
      %p125 = scmp.ne.s32.totalorder %s114, %s117
      %p126 = scmp.eq.s32.totalorder %s19, 1
      %p127 = por %p125, %p126
      %p128 = scmp.ne.s32.totalorder %s117, %s118
      %p129 = scmp.eq.s32.totalorder %s19, 0
      %p130 = por %p128, %p129
      %p131 = scmp.ne.s32.totalorder %s117, %s118
      %p132 = scmp.eq.s32.totalorder %s20, 1
      %p133 = por %p131, %p132
      %p135 = scmp.ne.s32.totalorder %s118, %s134
      %p136 = scmp.eq.s32.totalorder %s20, 0
      %p137 = por %p135, %p136
      %s139 = sadd.s32 %s138, 1
      %p142 = scmp.eq.s32.totalorder %s14, 1
      %p143 = scmp.ne.s32.totalorder %s138, %s140
      %p144 = scmp.eq.s32.totalorder %s14, 0
      %p145 = por %p143, %p144
      %p146 = scmp.ne.s32.totalorder %s138, %s140
      %p147 = scmp.eq.s32.totalorder %s19, 1
      %p148 = por %p146, %p147
      %p149 = scmp.ne.s32.totalorder %s140, %s141
      %p150 = scmp.eq.s32.totalorder %s19, 0
      %p151 = por %p149, %p150
      %p152 = scmp.ne.s32.totalorder %s140, %s141
      %p153 = scmp.eq.s32.totalorder %s20, 1
      %p154 = por %p152, %p153
      %p156 = scmp.ne.s32.totalorder %s141, %s155
      %p157 = scmp.eq.s32.totalorder %s20, 0
      %p158 = por %p156, %p157
      %s159 = ssub.s32 %s21, %s33
      %p160 = scmp.eq.s32.totalorder %s159, 0
      %s162 = sadd.s32 %s161, 1
      %s163 = scalar_select %p160, %s161, %s162
      %p166 = pneg %p160
      %p167 = scmp.eq.s32.totalorder %s14, 1
      %p168 = por %p166, %p167
      %p169 = scmp.ne.s32.totalorder %s161, %s164
      %p170 = scmp.eq.s32.totalorder %s14, 0
      %p171 = por %p169, %p170
      %p172 = scmp.ne.s32.totalorder %s161, %s164
      %p173 = scmp.eq.s32.totalorder %s19, 1
      %p174 = por %p172, %p173
      %p175 = scmp.ne.s32.totalorder %s164, %s165
      %p176 = scmp.eq.s32.totalorder %s19, 0
      %p177 = por %p175, %p176
      %p178 = scmp.ne.s32.totalorder %s164, %s165
      %p179 = scmp.eq.s32.totalorder %s20, 1
      %p180 = por %p178, %p179
      %p182 = scmp.ne.s32.totalorder %s165, %s181
      %p183 = scmp.eq.s32.totalorder %s20, 0
      %p184 = por %p182, %p183
      %p185 = scmp.le.s32.totalorder 1, %s14
      %p186 = scmp.lt.s32.totalorder %s14, 3
      %p187 = pnand %p185, %p186
      %p188 = pneg %p187
      // Predicated region
      $region9: #{tpu_custom_call.1} parent=5 // pred_check
        _
      $region10: #{tpu_custom_call.1} parent=5 // pred_check_branch
        %190 = sbr.rel (%p187) target = $region12
      $region11: #{tpu_custom_call.1} parent=5 // pred_region
        %s191 = ssub.s32 %s14, 1
        // Predicated region
        $region13: #{tpu_custom_call.1} parent=11 // pred_check
          %p192 = pneg %p78
        $region14: #{tpu_custom_call.1} parent=11 // pred_check_branch
          %194 = sbr.rel (%p192) target = $region16
        $region15: #{tpu_custom_call.1} parent=11 // pred_region
          %p195 = scmp.lt.s32.totalorder %s24, 0
          %s196 = scalar_select %p195, %s24, 0
          %s197 = smul.addr %s196, 8
          %s198 = scalar_lea.vmem %s1, %s197
        $region16: #{tpu_custom_call.1} parent=11 // pred_fallthru
          _
        // Predicated region
        $region17: #{tpu_custom_call.1} parent=11 // pred_check
          %p199 = pneg %p104
        $region18: #{tpu_custom_call.1} parent=11 // pred_check_branch
          %201 = sbr.rel (%p199) target = $region20
        $region19: #{tpu_custom_call.1} parent=11 // pred_region
          %p202 = scmp.lt.s32.totalorder %s24, 0
          %s203 = scalar_select %p202, %s24, 0
          %s204 = scalar_lea.vmem %s2, %s203
        $region20: #{tpu_custom_call.1} parent=11 // pred_fallthru
          _
        // Predicated region
        $region21: #{tpu_custom_call.1} parent=11 // pred_check
          %p205 = pneg %p130
        $region22: #{tpu_custom_call.1} parent=11 // pred_check_branch
          %207 = sbr.rel (%p205) target = $region24
        $region23: #{tpu_custom_call.1} parent=11 // pred_region
          %s208 = smul.u32 16, %s24
          %p209 = scmp.lt.s32.totalorder %s208, 15
          %s210 = scalar_select %p209, %s208, 15
          %s211 = smul.addr %s210, 8
          %s212 = scalar_lea.vmem %s3, %s211
          %s213 = smul.u32 16, %s24
        $region24: #{tpu_custom_call.1} parent=11 // pred_fallthru
          _
        // Predicated region
        $region25: #{tpu_custom_call.1} parent=11 // pred_check
          %p214 = pneg %p151
        $region26: #{tpu_custom_call.1} parent=11 // pred_check_branch
          %216 = sbr.rel (%p214) target = $region28
        $region27: #{tpu_custom_call.1} parent=11 // pred_region
          _
        $region28: #{tpu_custom_call.1} parent=11 // pred_fallthru
          _
      $region12: #{tpu_custom_call.1} parent=5 // pred_fallthru
        _
      %p217 = scmp.lt.s32.totalorder %s14, 2
      // Predicated region
      $region29: #{tpu_custom_call.1} parent=5 // pred_check
        %p218 = pneg %p217
      $region30: #{tpu_custom_call.1} parent=5 // pred_check_branch
        %220 = sbr.rel (%p218) target = $region32
      $region31: #{tpu_custom_call.1} parent=5 // pred_region
        // Predicated region
        $region33: #{tpu_custom_call.1} parent=31 // pred_check
          %p221 = pneg %p46
        $region34: #{tpu_custom_call.1} parent=31 // pred_check_branch
          %223 = sbr.rel (%p221) target = $region36
        $region35: #{tpu_custom_call.1} parent=31 // pred_region
          %p224 = scmp.lt.s32.totalorder %s21, 1
          %s225 = scalar_select %p224, %s21, 1
          %s226 = smul.addr %s225, 8
          %s227 = scalar_lea.vmem %s0, %s226
        $region36: #{tpu_custom_call.1} parent=31 // pred_fallthru
          _
      $region32: #{tpu_custom_call.1} parent=5 // pred_fallthru
        _
      %p228 = scmp.le.s32.totalorder 1, %s14
      %p229 = scmp.lt.s32.totalorder %s14, 3
      %p230 = pnand %p228, %p229
      %p231 = pneg %p230
      // Predicated region
      $region37: #{tpu_custom_call.1} parent=5 // pred_check
        _
      $region38: #{tpu_custom_call.1} parent=5 // pred_check_branch
        %233 = sbr.rel (%p230) target = $region40
      $region39: #{tpu_custom_call.1} parent=5 // pred_region
        %s234 = ssub.s32 %s14, 1
        %p235 = scmp.lt.s32.totalorder %s23, 1
        %s236 = scalar_select %p235, %s23, 1
        %s237 = smul.addr %s236, 8
        %s238 = scalar_lea.vmem %s0, %s237
        %p239 = pneg %p52
        %p240 = pneg %p49
        %p241 = scmp.lt.s32.totalorder %s24, 0
        %s242 = scalar_select %p241, %s24, 0
        %s243 = smul.addr %s242, 8
        %s244 = scalar_lea.vmem %s1, %s243
        %p245 = pneg %p78
        %p246 = pneg %p75
        %p247 = scmp.lt.s32.totalorder %s24, 0
        %s248 = scalar_select %p247, %s24, 0
        %s249 = scalar_lea.vmem %s2, %s248
        %p250 = pneg %p104
        %p251 = pneg %p101
        %s252 = smul.u32 16, %s24
        %p253 = scmp.lt.s32.totalorder %s252, 15
        %s254 = scalar_select %p253, %s252, 15
        %s255 = smul.addr %s254, 8
        %s256 = scalar_lea.vmem %s3, %s255
        %p257 = pneg %p130
        %p258 = pneg %p127
        %p259 = pneg %p151
        %p260 = pneg %p148
        %p261 = pneg %p177
        %p262 = pneg %p174
        %s263 = sand.u32 %s164, 1
        %s264 = scalar_lea.sflag [#allocation3], %s263
        %s265 = sand.u32 %s164, 1
        %s266 = smul.addr %s265, 8
        %s267 = scalar_lea.vmem [#allocation2], %s266
        %p268 = scmp.lt.s32.totalorder %s23, 1
        %s269 = scalar_select %p268, %s23, 1
        %s270 = smul.addr %s269, 8
        %s271 = scalar_lea.vmem %s0, %s270
        %p272 = scmp.lt.s32.totalorder %s24, 0
        %s273 = scalar_select %p272, %s24, 0
        %s274 = smul.addr %s273, 8
        %s275 = scalar_lea.vmem %s1, %s274
        %p276 = scmp.lt.s32.totalorder %s24, 0
        %s277 = scalar_select %p276, %s24, 0
        %s278 = scalar_lea.vmem %s2, %s277
        %s279 = smul.u32 16, %s24
        %p280 = scmp.lt.s32.totalorder %s279, 15
        %s281 = scalar_select %p280, %s279, 15
        %s282 = smul.addr %s281, 8
        %s283 = scalar_lea.vmem %s3, %s282
        %s284 = smul.u32 16, %s24
        %v285 = vld [vmem:[%s271] sm:$0xff]
        %v286 = vld [vmem:[%s275] sm:$0xff]
        %v287 = vld [vmem:[%s275 + $0x8] sm:$0xff]
        %v288 = vld [vmem:[%s275 + $0x10] sm:$0xff]
        %v289 = vld [vmem:[%s275 + $0x18] sm:$0xff]
        %v290 = vld [vmem:[%s278] sm:$0x1]
        %v292 = vlaneseq
        %v293 = vshrl.u32 %v292, 7
        %v294 = vsub.s32 0, %v293
        %v295 = vrot.slane %v290, %v294
        %vm297 = vcmask 261120
        %v299 = vsel %vm297, %v285, 0
        %301 = vmatprep.subr.mxu0 0.0
        %302 = vmatpush1.msra.mxu0 0.0
        %303 = vmatprep.subr.mxu0 0.0
        %304 = vmatpush1.msra.mxu0 0.0
        %305 = vmatprep.subr.mxu0 0.0
        %306 = vmatpush1.msra.mxu0 0.0
        %307 = vmatprep.subr.mxu0 0.0
        %308 = vmatpush1.msra.mxu0 0.0
        %309 = vmatprep.subr.mxu0 0.0
        %310 = vmatpush1.msra.mxu0 0.0
        %311 = vmatprep.subr.mxu0 0.0
        %312 = vmatpush1.msra.mxu0 0.0
        %313 = vmatprep.subr.mxu0 0.0
        %314 = vmatpush1.msra.mxu0 0.0
        %315 = vmatprep.subr.mxu0 0.0
        %316 = vmatpush1.msra.mxu0 0.0
        %317 = vmatprep.subr.mxu0 0.0
        %318 = vmatpush1.msra.mxu0 0.0
        %319 = vmatprep.subr.mxu0 0.0
        %320 = vmatpush1.msra.mxu0 0.0
        %321 = vmatprep.subr.mxu0 0.0
        %322 = vmatpush1.msra.mxu0 0.0
        %323 = vmatprep.subr.mxu0 0.0
        %324 = vmatpush1.msra.mxu0 0.0
        %325 = vmatprep.subr.mxu0 0.0
        %326 = vmatpush1.msra.mxu0 %v289
        %327 = vmatprep.subr.mxu0 0.0
        %328 = vmatpush1.msra.mxu0 %v288
        %329 = vmatprep.subr.mxu0 0.0
        %330 = vmatpush1.msra.mxu0 %v287
        %331 = vmatprep.subr.mxu0 0.0
        %332 = vmatpush1.msra.mxu0 %v286
        %333 = vmatprep.subr.mxu0 0.0
        %334 = vmatpush2.msra.mxu0 0.0
        %335 = vmatprep.subr.mxu0 0.0
        %336 = vmatpush2.msra.mxu0 0.0
        %337 = vmatprep.subr.mxu0 0.0
        %338 = vmatpush2.msra.mxu0 0.0
        %339 = vmatprep.subr.mxu0 0.0
        %340 = vmatpush2.msra.mxu0 0.0
        %341 = vmatprep.subr.mxu0 0.0
        %342 = vmatpush2.msra.mxu0 0.0
        %343 = vmatprep.subr.mxu0 0.0
        %344 = vmatpush2.msra.mxu0 0.0
        %345 = vmatprep.subr.mxu0 0.0
        %346 = vmatpush2.msra.mxu0 0.0
        %347 = vmatprep.subr.mxu0 0.0
        %348 = vmatpush2.msra.mxu0 0.0
        %349 = vmatprep.subr.mxu0 0.0
        %350 = vmatpush2.msra.mxu0 0.0
        %351 = vmatprep.subr.mxu0 0.0
        %352 = vmatpush2.msra.mxu0 0.0
        %353 = vmatprep.subr.mxu0 0.0
        %354 = vmatpush2.msra.mxu0 0.0
        %355 = vmatprep.subr.mxu0 0.0
        %356 = vmatpush2.msra.mxu0 0.0
        %357 = vmatprep.subr.mxu0 0.0
        %358 = vmatpush2.msra.mxu0 0.0
        %359 = vmatprep.subr.mxu0 0.0
        %360 = vmatpush2.msra.mxu0 0.0
        %361 = vmatprep.subr.mxu0 0.0
        %362 = vmatpush2.msra.mxu0 0.0
        %363 = vmatprep.subr.mxu0 0.0
        %364 = vmatpush2.msra.mxu0 0.0
        %365 = vmatprep.mubr.f32.mxu0 0.0
        %366 = vmatmul.mubr.f32.gmra.mxu0 %v299
        %v367 = vpop.f32.mrf.mxu0
        %v368 = vadd.f32 %v295, %v367
        %v369 = vpop.f32.mrf.mxu0
        %370 = vdwg.mxu0
        %v371 = vmul.f32 %v368, 0.5
        %v372 = vmul.f32 %v368, %v368
        %v373 = vmul.f32 %v372, %v368
        %v374 = vmul.f32 %v373, 0.044715
        %v375 = vadd.f32 %v368, %v374
        %v376 = vmul.f32 %v375, 0.7978846
        %v377 = vtanh.pop %v376
        %v378 = vadd.f32 %v377, 1.0
        %v379 = vmul.f32 %v371, %v378
        %v380 = vld [vmem:[%s283] sm:$0xff]
        %v381 = vld [vmem:[%s283 + $0x8] sm:$0xff]
        %v382 = vld [vmem:[%s283 + $0x10] sm:$0xff]
        %v383 = vld [vmem:[%s283 + $0x18] sm:$0xff]
        %v384 = vld [vmem:[%s283 + $0x20] sm:$0xff]
        %v385 = vld [vmem:[%s283 + $0x28] sm:$0xff]
        %v386 = vld [vmem:[%s283 + $0x30] sm:$0xff]
        %v387 = vld [vmem:[%s283 + $0x38] sm:$0xff]
        %v388 = vld [vmem:[%s283 + $0x40] sm:$0xff]
        %v389 = vld [vmem:[%s283 + $0x48] sm:$0xff]
        %v390 = vld [vmem:[%s283 + $0x50] sm:$0xff]
        %v391 = vld [vmem:[%s283 + $0x58] sm:$0xff]
        %v392 = vld [vmem:[%s283 + $0x60] sm:$0xff]
        %v393 = vld [vmem:[%s283 + $0x68] sm:$0xff]
        %v394 = vld [vmem:[%s283 + $0x70] sm:$0xff]
        %v395 = vld [vmem:[%s283 + $0x78] sm:$0xff]
        %396 = vmatprep.subr.mxu0 0.0
        %397 = vmatpush1.msra.mxu0 %v395
        %398 = vmatprep.subr.mxu0 0.0
        %399 = vmatpush1.msra.mxu0 %v394
        %400 = vmatprep.subr.mxu0 0.0
        %401 = vmatpush1.msra.mxu0 %v393
        %402 = vmatprep.subr.mxu0 0.0
        %403 = vmatpush1.msra.mxu0 %v392
        %404 = vmatprep.subr.mxu0 0.0
        %405 = vmatpush1.msra.mxu0 %v391
        %406 = vmatprep.subr.mxu0 0.0
        %407 = vmatpush1.msra.mxu0 %v390
        %408 = vmatprep.subr.mxu0 0.0
        %409 = vmatpush1.msra.mxu0 %v389
        %410 = vmatprep.subr.mxu0 0.0
        %411 = vmatpush1.msra.mxu0 %v388
        %412 = vmatprep.subr.mxu0 0.0
        %413 = vmatpush1.msra.mxu0 %v387
        %414 = vmatprep.subr.mxu0 0.0
        %415 = vmatpush1.msra.mxu0 %v386
        %416 = vmatprep.subr.mxu0 0.0
        %417 = vmatpush1.msra.mxu0 %v385
        %418 = vmatprep.subr.mxu0 0.0
        %419 = vmatpush1.msra.mxu0 %v384
        %420 = vmatprep.subr.mxu0 0.0
        %421 = vmatpush1.msra.mxu0 %v383
        %422 = vmatprep.subr.mxu0 0.0
        %423 = vmatpush1.msra.mxu0 %v382
        %424 = vmatprep.subr.mxu0 0.0
        %425 = vmatpush1.msra.mxu0 %v381
        %426 = vmatprep.subr.mxu0 0.0
        %427 = vmatpush1.msra.mxu0 %v380
        %428 = vmatprep.subr.mxu0 0.0
        %429 = vmatpush2.msra.mxu0 0.0
        %430 = vmatprep.subr.mxu0 0.0
        %431 = vmatpush2.msra.mxu0 0.0
        %432 = vmatprep.subr.mxu0 0.0
        %433 = vmatpush2.msra.mxu0 0.0
        %434 = vmatprep.subr.mxu0 0.0
        %435 = vmatpush2.msra.mxu0 0.0
        %436 = vmatprep.subr.mxu0 0.0
        %437 = vmatpush2.msra.mxu0 0.0
        %438 = vmatprep.subr.mxu0 0.0
        %439 = vmatpush2.msra.mxu0 0.0
        %440 = vmatprep.subr.mxu0 0.0
        %441 = vmatpush2.msra.mxu0 0.0
        %442 = vmatprep.subr.mxu0 0.0
        %443 = vmatpush2.msra.mxu0 0.0
        %444 = vmatprep.subr.mxu0 0.0
        %445 = vmatpush2.msra.mxu0 0.0
        %446 = vmatprep.subr.mxu0 0.0
        %447 = vmatpush2.msra.mxu0 0.0
        %448 = vmatprep.subr.mxu0 0.0
        %449 = vmatpush2.msra.mxu0 0.0
        %450 = vmatprep.subr.mxu0 0.0
        %451 = vmatpush2.msra.mxu0 0.0
        %452 = vmatprep.subr.mxu0 0.0
        %453 = vmatpush2.msra.mxu0 0.0
        %454 = vmatprep.subr.mxu0 0.0
        %455 = vmatpush2.msra.mxu0 0.0
        %456 = vmatprep.subr.mxu0 0.0
        %457 = vmatpush2.msra.mxu0 0.0
        %458 = vmatprep.subr.mxu0 0.0
        %459 = vmatpush2.msra.mxu0 0.0
        %460 = vmatprep.mubr.f32.mxu0 0.0
        %461 = vmatmul.mubr.f32.gmra.mxu0 %v379
        %v462 = vpop.f32.mrf.mxu0
        %v463 = vadd.f32 0.0, %v462
        %v464 = vpop.f32.mrf.mxu0
        %465 = vdwg.mxu0
        %p466 = scmp.eq.s32.totalorder %s24, 0
        // Predicated region
        $region41: #{tpu_custom_call.1} parent=39 // pred_check
          %p467 = pneg %p466
        $region42: #{tpu_custom_call.1} parent=39 // pred_check_branch
          %469 = sbr.rel (%p467) target = $region44
        $region43: #{tpu_custom_call.1} parent=39 // pred_region
          %470 = vst.msk [vmem:[%s267] sm:$0xff] %vm297, %v463
        $region44: #{tpu_custom_call.1} parent=39 // pred_fallthru
          _
        %p471 = scmp.gt.s32.totalorder %s24, 0
        // Predicated region
        $region45: #{tpu_custom_call.1} parent=39 // pred_check
          %p472 = pneg %p471
        $region46: #{tpu_custom_call.1} parent=39 // pred_check_branch
          %474 = sbr.rel (%p472) target = $region48
        $region47: #{tpu_custom_call.1} parent=39 // pred_region
          %v475 = vld [vmem:[%s267] sm:$0xff]
          %v476 = vadd.f32 %v475, %v463
          %477 = vst.msk [vmem:[%s267] sm:$0xff] %vm297, %v476
        $region48: #{tpu_custom_call.1} parent=39 // pred_fallthru
          _
        // Predicated region
        $region49: #{tpu_custom_call.1} parent=39 // pred_check
          %p478 = pneg %p466
        $region50: #{tpu_custom_call.1} parent=39 // pred_check_branch
          %480 = sbr.rel (%p478) target = $region52
        $region51: #{tpu_custom_call.1} parent=39 // pred_region
          %v481 = vld [vmem:[%s267] sm:$0xff]
          %v482 = vld [vmem:[%s4] sm:$0x1]
          %v484 = vlaneseq
          %v485 = vshrl.u32 %v484, 7
          %v486 = vsub.s32 0, %v485
          %v487 = vrot.slane %v482, %v486
          %v489 = vadd.f32 %v481, %v487
          %490 = vst.msk [vmem:[%s267] sm:$0xff] %vm297, %v489
        $region52: #{tpu_custom_call.1} parent=39 // pred_fallthru
          _
        %s491 = sand.u32 %s164, 1
        %s492 = scalar_lea.sflag [#allocation3], %s491
        %s493 = sand.u32 %s164, 1
        %s494 = smul.addr %s493, 8
        %s495 = scalar_lea.vmem [#allocation2], %s494
        // Predicated region
        $region53: #{tpu_custom_call.1} parent=39 // pred_check
          %p496 = pneg %p174
        $region54: #{tpu_custom_call.1} parent=39 // pred_check_branch
          %498 = sbr.rel (%p496) target = $region56
        $region55: #{tpu_custom_call.1} parent=39 // pred_region
          %s500 = ssub.s32 128, 128
          %501 = vsyncadd %s492, %s500
          %s502 = smul.addr %s23, 128
          %s503 = scalar_lea.hbm %s5, %s502
          %s505 = sshll.u32 %s495, 4
          %s506 = int_to_ptr.vmem [resolvable:$true] %s505
          %508 = dma.vmem_to_hbm [thread:$0]  %s506, 128, %s503, %s492
        $region56: #{tpu_custom_call.1} parent=39 // pred_fallthru
          _
      $region40: #{tpu_custom_call.1} parent=5 // pred_fallthru
        _
      %p509 = scmp.le.s32.totalorder 2, %s14
      // Predicated region
      $region57: #{tpu_custom_call.1} parent=5 // pred_check
        %p510 = pneg %p509
      $region58: #{tpu_custom_call.1} parent=5 // pred_check_branch
        %512 = sbr.rel (%p510) target = $region60
      $region59: #{tpu_custom_call.1} parent=5 // pred_region
        %s513 = ssub.s32 %s14, 2
        // Predicated region
        $region61: #{tpu_custom_call.1} parent=59 // pred_check
          %p514 = pneg %p180
        $region62: #{tpu_custom_call.1} parent=59 // pred_check_branch
          %516 = sbr.rel (%p514) target = $region64
        $region63: #{tpu_custom_call.1} parent=59 // pred_region
          %s517 = sand.u32 %s165, 1
          %s518 = scalar_lea.sflag [#allocation3], %s517
          %s519 = sand.u32 %s165, 1
          %s520 = smul.addr %s519, 8
          %s521 = scalar_lea.vmem [#allocation2], %s520
          %522 = dma.done %s518, 128
        $region64: #{tpu_custom_call.1} parent=59 // pred_fallthru
          _
      $region60: #{tpu_custom_call.1} parent=5 // pred_fallthru
        _
    $region6: #{tpu_custom_call.1} parent=1 // loop_footer
      %s18 = sadd.s32 1, %s14
    $region7: #{tpu_custom_call.1} parent=1 // loop_footer_branch
      %13 = sbr.rel target = $region3
    $region8: #{tpu_custom_call.1} parent=1 // loop_exit
      _
    %523 = vsyncpa [#allocation3], 1
    %s524 = scalar_lea.sflag [#allocation3], 1
    %525 = vsyncpa %s524, 1

</llo_original>
